<compile_context>
chip_gen: v6e
topology: v6e:2x2x1
jax: 0.10.0
libtpu: 0.0.40
codegen_flags: <defaults>
</compile_context>

<pallas_src>
import functools

import jax
import jax.numpy as jnp
from jax.experimental import pallas as pl
from jax.experimental.pallas import tpu as pltpu


_LANES = 128
_MAX_TILE_ROWS = 4096        # 4096 * 128 * 4 B = 2 MiB per f32 block
_PALLAS_MIN_ELEMS = 16384    # below this, plain XLA elementwise wins


def _quantize_kernel(x_ref, o_ref, *, n: float, inv_n: float):
    # Purely elementwise: compute in f32 on VPU/EUP, store in caller dtype.
    x = x_ref[...].astype(jnp.float32)
    w = jnp.tanh(x)                      # EUP
    u = jnp.sqrt(jnp.abs(w))             # |u| = sqrt(|tanh(x)|)   (EUP)
    q = jnp.floor(u * n) * inv_n         # multiply by 1/n (no vector divide)
    q2 = q * q
    # q2 >= 0, so applying sign(w) is a single select (cheaper than sign()*mul).
    out = jnp.where(w < 0, -q2, q2)
    o_ref[...] = out.astype(o_ref.dtype)


def _quantize_jnp(x: jax.Array, wbit: int) -> jax.Array:
    """Plain-JAX path for tiny tensors (same math as the kernel)."""
    xf = x.astype(jnp.float32)
    w = jnp.tanh(xf)
    u = jnp.sqrt(jnp.abs(w))
    n = float(2 ** (wbit - 1) - 1)
    q = jnp.floor(u * n) / n
    q2 = q * q
    return jnp.where(w < 0, -q2, q2).astype(x.dtype)


@functools.partial(jax.jit, static_argnums=(1,), static_argnames=("use_pallas",))
def weight_quantize_fn(x: jax.Array, wbit: int, *, use_pallas=None) -> jax.Array:
    """Pallas TPU implementation of weight_quantize_fn.forward."""
    assert wbit <= 8 or wbit == 32
    if wbit == 32:
        return x

    if use_pallas is None:
        use_pallas = x.size >= _PALLAS_MIN_ELEMS
    if not use_pallas:
        return _quantize_jnp(x, wbit)

    orig_shape = x.shape
    orig_dtype = x.dtype
    size = x.size

    # Flatten to a lane-dense 2-D slab (rows, 128).  Only pad when the flat
    # size is not already a multiple of 128 (rare for real weight tensors) —
    # padding and the post-slice are extra HBM passes.
    xf = jnp.ravel(x)
    padded = pl.cdiv(size, _LANES) * _LANES
    if padded != size:
        xf = jnp.pad(xf, (0, padded - size))
    rows = padded // _LANES
    x2d = xf.reshape(rows, _LANES)

    # Block choice: either the whole slab (block == full array dims, always a
    # legal block shape), or a 4096-row (2 MiB f32 / 1 MiB bf16) tile with a
    # cdiv grid; the ragged edge block is handled by Pallas.
    tile_rows = rows if rows <= _MAX_TILE_ROWS else _MAX_TILE_ROWS
    grid = (pl.cdiv(rows, tile_rows),)

    n = float(2 ** (wbit - 1) - 1)
    inv_n = 1.0 / n

    out2d = pl.pallas_call(
        functools.partial(_quantize_kernel, n=n, inv_n=inv_n),
        out_shape=jax.ShapeDtypeStruct((rows, _LANES), orig_dtype),
        grid=grid,
        in_specs=[pl.BlockSpec((tile_rows, _LANES), lambda i: (i, 0))],
        out_specs=pl.BlockSpec((tile_rows, _LANES), lambda i: (i, 0)),
        compiler_params=pltpu.CompilerParams(
            dimension_semantics=("parallel",)
        ),
    )(x2d)

    if padded != size:
        out = out2d.reshape(-1)[:size].reshape(orig_shape)
    else:
        out = out2d.reshape(orig_shape)
    return out


def _reference(x, wbit):
    if wbit == 32:
        return x
    w = jnp.tanh(x.astype(jnp.float32))
    u = jnp.sign(w) * jnp.abs(w) ** 0.5
    n = float(2 ** (wbit - 1) - 1)
    q = jnp.floor(jnp.abs(u) * n) / n
    return ((q ** 2) * jnp.sign(u)).astype(x.dtype)


if __name__ == "__main__":
    key = jax.random.PRNGKey(0)
    wbit = 4

    # 1) Small NCHW tensor from the module spec — force the Pallas path
    #    (single full-slab block, no padding since 2048 % 128 == 0).
    x_small = jax.random.normal(key, (2, 4, 16, 16), dtype=jnp.float32)
    out_small = jax.block_until_ready(
        weight_quantize_fn(x_small, wbit, use_pallas=True))
    assert out_small.shape == x_small.shape and out_small.dtype == x_small.dtype
    assert jnp.allclose(out_small, _reference(x_small, wbit),
                        atol=1e-6, rtol=1e-5), "small: mismatch vs reference"

    # Default dispatch for the same small tensor (plain-JAX fallback path).
    out_auto = jax.block_until_ready(weight_quantize_fn(x_small, wbit))
    assert jnp.allclose(out_auto, _reference(x_small, wbit),
                        atol=1e-6, rtol=1e-5), "auto: mismatch vs reference"

    # 2) Larger conv-weight-like tensor: exercises the tiled grid (>1 step).
    k2 = jax.random.PRNGKey(1)
    x_big = jax.random.normal(k2, (64, 256, 8, 8), dtype=jnp.float32)
    out_big = jax.block_until_ready(weight_quantize_fn(x_big, wbit))
    assert jnp.allclose(out_big, _reference(x_big, wbit),
                        atol=1e-6, rtol=1e-5), "big: mismatch vs reference"

    # 3) bf16 weights: exercises the in-kernel f32 upcast / downcast path.
    x_bf = x_big.astype(jnp.bfloat16)
    out_bf = jax.block_until_ready(weight_quantize_fn(x_bf, wbit))
    assert out_bf.dtype == jnp.bfloat16
    assert jnp.allclose(out_bf.astype(jnp.float32),
                        _reference(x_bf, wbit).astype(jnp.float32),
                        atol=2e-2, rtol=2e-2), "bf16: mismatch vs reference"

    # 4) Ragged flat size (not a multiple of 128): exercises pad/slice path.
    k3 = jax.random.PRNGKey(2)
    x_rag = jax.random.normal(k3, (1000,), dtype=jnp.float32)
    out_rag = jax.block_until_ready(
        weight_quantize_fn(x_rag, wbit, use_pallas=True))
    assert jnp.allclose(out_rag, _reference(x_rag, wbit),
                        atol=1e-6, rtol=1e-5), "ragged: mismatch vs reference"

    # 5) wbit == 32 identity path.
    out32 = jax.block_until_ready(weight_quantize_fn(x_small, 32))
    assert jnp.array_equal(out32, x_small)

    print("KERNEL_OK")
</pallas_src>

<mosaic_0001>
module attributes {stable_mosaic.version = 11 : i64} {
  func.func @_quantize_kernel(%arg0: i32, %arg1: memref<16x128xf32, #tpu.memory_space<vmem>>, %arg2: memref<16x128xf32, #tpu.memory_space<vmem>>) attributes {dimension_semantics = [#tpu.dimension_semantics<parallel>], iteration_bounds = array<i64: 1>, scalar_prefetch = 0 : i64, scratch_operands = 0 : i64, tpu.core_type = #tpu.core_type<tc>, window_params = [{transform_indices = @transform_0, window_bounds = array<i64: 16, 128>}, {transform_indices = @transform_1, window_bounds = array<i64: 16, 128>}]} {
    %c0 = arith.constant 0 : index
    %c0_0 = arith.constant 0 : index
    %0 = vector.load %arg1[%c0, %c0_0] : memref<16x128xf32, #tpu.memory_space<vmem>>, vector<16x128xf32>
    %1 = math.tanh %0 : vector<16x128xf32>
    %2 = math.absf %1 : vector<16x128xf32>
    %3 = math.sqrt %2 : vector<16x128xf32>
    %cst = arith.constant 7.000000e+00 : f32
    %4 = vector.broadcast %cst : f32 to vector<16x128xf32>
    %5 = arith.mulf %3, %4 : vector<16x128xf32>
    %6 = math.floor %5 : vector<16x128xf32>
    %cst_1 = arith.constant 0.142857149 : f32
    %7 = vector.broadcast %cst_1 : f32 to vector<16x128xf32>
    %8 = arith.mulf %6, %7 : vector<16x128xf32>
    %9 = arith.mulf %8, %8 : vector<16x128xf32>
    %cst_2 = arith.constant 0.000000e+00 : f32
    %10 = vector.broadcast %cst_2 : f32 to vector<16x128xf32>
    %11 = arith.cmpf olt, %1, %10 : vector<16x128xf32>
    %cst_3 = arith.constant 0.000000e+00 : f32
    %12 = vector.broadcast %cst_3 : f32 to vector<16x128xf32>
    %13 = arith.subf %12, %9 : vector<16x128xf32>
    %14 = arith.select %11, %13, %9 : vector<16x128xi1>, vector<16x128xf32>
    %c0_4 = arith.constant 0 : index
    %c0_5 = arith.constant 0 : index
    %15 = vector.load %arg2[%c0_4, %c0_5] : memref<16x128xf32, #tpu.memory_space<vmem>>, vector<16x128xf32>
    tpu.vector_store %arg2[%c0_4, %c0_5], %14 {strides = array<i32>} : memref<16x128xf32, #tpu.memory_space<vmem>>, vector<16x128xf32>,
    return
  }
  func.func @transform_0(%arg0: i32) -> (i32, i32) {
    %c0_i32 = arith.constant 0 : i32
    %c0_i32_0 = arith.constant 0 : i32
    return %arg0, %c0_i32 : i32, i32
  }
  func.func @transform_1(%arg0: i32) -> (i32, i32) {
    %c0_i32 = arith.constant 0 : i32
    %c0_i32_0 = arith.constant 0 : i32
    return %arg0, %c0_i32 : i32, i32
  }
}

</mosaic_0001>

<llo_original>
// kernel: weight_quantize_fn.1
$region0: #{weight_quantize_fn.1}
  #allocation0 [shape = 'u32[]', space=smem, size = 0x4, offset = 0x4, fixed_abs, tag = 'smem constant byte address 0x4 - core index']
  #allocation1 [shape = 'u32[144,128]{1,0:T(1,128)}', space=vmem, size = 0x12000, scoped, tag = 'internal scratch']
  %s0 = inlined_call_operand.vmem [shape: f32[16,128], index: 0, kind: input, shape index: {}]
  %s1 = inlined_call_operand.vmem [shape: f32[16,128], index: 1, kind: output, shape index: {}]
  %s2 = sld [smem:[#allocation0]]
  $region14: #{weight_quantize_fn.1} parent=0
    _
  %s4 = ssub.s32 1, %s2
  %s5 = scalar_select 0, %s4, %s2
  // Predicated region
  $region2: #{weight_quantize_fn.1} parent=0 // pred_check
    _
  $region3: #{weight_quantize_fn.1} parent=0 // pred_check_branch
    %7 = sbr.rel (0) target = $region5
  $region4: #{weight_quantize_fn.1} parent=0 // pred_region
    _
  $region5: #{weight_quantize_fn.1} parent=0 // pred_fallthru
    _
  %v8 = vld [vmem:[%s0] sm:$0xff]
  %v9 = vld [vmem:[%s0 + $0x8] sm:$0xff]
  %v10 = vtanh.pop %v8
  %v11 = vtanh.pop %v9
  %v12 = vand.u32 2147483647, %v10
  %v13 = vand.u32 2147483647, %v11
  %v14 = vrsqrt.pop %v12
  %v15 = vmul.f32 %v12, %v14
  %vm16 = vcmp.eq.f32.partialorder %v12, inf
  %v17 = vsel %vm16, %v12, %v15
  %vm18 = vcmp.eq.f32.partialorder %v12, 0.0
  %v19 = vand.u32 %v12, 2147483648
  %v20 = vsel %vm18, %v19, %v17
  %v21 = vrsqrt.pop %v13
  %v22 = vmul.f32 %v13, %v21
  %vm23 = vcmp.eq.f32.partialorder %v13, inf
  %v24 = vsel %vm23, %v13, %v22
  %vm25 = vcmp.eq.f32.partialorder %v13, 0.0
  %v26 = vand.u32 %v13, 2147483648
  %v27 = vsel %vm25, %v26, %v24
  %v28 = vmul.f32 %v20, 7.0
  %v29 = vmul.f32 %v27, 7.0
  %v30 = vfloor.f32 %v28
  %v31 = vfloor.f32 %v29
  %v32 = vmul.f32 %v30, 0.14285715
  %v33 = vmul.f32 %v31, 0.14285715
  %v34 = vmul.f32 %v32, %v32
  %v35 = vmul.f32 %v33, %v33
  %vm36 = vcmp.lt.f32.partialorder %v10, 0.0
  %vm37 = vcmp.lt.f32.partialorder %v11, 0.0
  %v38 = vsub.f32 0.0, %v34
  %v39 = vsub.f32 0.0, %v35
  %v40 = vsel %vm36, %v38, %v34
  %v41 = vsel %vm37, %v39, %v35
  %42 = vst [vmem:[%s1] sm:$0xff] %v40
  %43 = vst [vmem:[%s1 + $0x8] sm:$0xff] %v41
  // Predicated region
  $region6: #{weight_quantize_fn.1} parent=0 // pred_check
    _
  $region7: #{weight_quantize_fn.1} parent=0 // pred_check_branch
    %45 = sbr.rel (0) target = $region9
  $region8: #{weight_quantize_fn.1} parent=0 // pred_region
    _
  $region9: #{weight_quantize_fn.1} parent=0 // pred_fallthru
    _
  // Predicated region
  $region10: #{weight_quantize_fn.1} parent=0 // pred_check
    _
  $region11: #{weight_quantize_fn.1} parent=0 // pred_check_branch
    %47 = sbr.rel (0) target = $region13
  $region12: #{weight_quantize_fn.1} parent=0 // pred_region
    _
  $region13: #{weight_quantize_fn.1} parent=0 // pred_fallthru
    _

</llo_original>
